<compile_context>
chip_gen: v7x
topology: tpu7x:2x2x1
jax: 0.10.0
libtpu: 0.0.40
codegen_flags: <defaults>
</compile_context>

<pallas_src>
import functools

import jax
import jax.numpy as jnp
from jax import lax
from jax.experimental import pallas as pl
from jax.experimental.pallas import tpu as pltpu


def _round_up(x, m):
    return ((x + m - 1) // m) * m


def _embedding_gather_kernel(ids_ref, table_ref, o_ref, *, n_groups, vocab, hidden):
    """Gather TG * n_groups token embeddings in one grid step.

    ids_ref   : (TG, G) int32   token ids; flat token index = row * G + g
    table_ref : (V, H)  f32     plain embedding table (VMEM resident)
    o_ref     : (TG, G*H) f32   lane-dense output slab; columns [g*H:(g+1)*H]
                                of row r hold the embedding of token r*G + g
    """
    tg = o_ref.shape[0]
    ids = ids_ref[...]                                       # (TG, G) int32
    table = table_ref[...]                                   # (V, H)
    col = lax.broadcasted_iota(jnp.int32, (tg, vocab), 1)    # (TG, V)

    # G small exact one-hot matmuls against the *plain* table -- no
    # block-diagonal replication, total MACs = tile_tokens * V * H (minimum).
    for g in range(n_groups):                                # static unroll
        onehot = (col == ids[:, g:g + 1]).astype(table.dtype)   # exact 0/1
        emb = jnp.dot(onehot, table, preferred_element_type=jnp.float32)
        o_ref[:, g * hidden:(g + 1) * hidden] = emb.astype(o_ref.dtype)


def token_embedding_direct(x, emb_table, *, tile_tokens=512, lane_target=128):
    """x: (B, L) integer token ids; emb_table: (V, H) f32 -> (B, L, H) f32."""
    B, L = x.shape
    V, H = emb_table.shape

    # Lane-folding factor: fold G consecutive tokens into the lane axis so the
    # stored last dim is a multiple of 128 (unmasked, lane-dense HBM stores).
    if H < lane_target and lane_target % H == 0:
        n_groups = lane_target // H
    else:
        n_groups = 1

    row_align = 8 * n_groups                 # keeps TG a multiple of 8 (>= 8)
    N = B * L

    # Tokens per grid step: big enough to amortize per-step pipeline overhead,
    # but never pad a tiny input past a single (aligned) tile.
    T = max(row_align, (tile_tokens // row_align) * row_align)
    T = min(T, _round_up(N, row_align))
    TG = T // n_groups
    assert TG >= 8 and TG % 8 == 0, (T, n_groups)

    N_pad = _round_up(N, T)
    n_steps = N_pad // T

    # Flatten + pad the token axis (padding id 0 -> sliced off below).
    ids_flat = jnp.pad(jnp.ravel(x).astype(jnp.int32), (0, N_pad - N))
    ids2 = ids_flat.reshape(N_pad // n_groups, n_groups)     # (N_pad/G, G)

    # ---- Explicit VMEM budget (binding constraint is v7x: 64 MiB per TC). ----
    esize = jnp.dtype(emb_table.dtype).itemsize
    out_block = TG * n_groups * H * esize              # one output buffer
    ids_block = TG * 128 * 4                           # lane-padded ids tile
    table_res = _round_up(V, 8) * _round_up(H, 128) * esize
    onehot_tmp = TG * _round_up(V, 128) * 4            # per-group intermediate
    need = 2 * out_block + 2 * ids_block + 2 * table_res + onehot_tmp
    vmem_limit = int(min(48 << 20, max(32 << 20, 4 * need)))

    kernel = functools.partial(_embedding_gather_kernel,
                               n_groups=n_groups, vocab=V, hidden=H)

    def make_call(single_buffer_table):
        if single_buffer_table:
            # Constant index -> table logically resident; Buffered(1) stops the
            # pipeline from allocating a second (useless) buffer for it.
            table_spec = pl.BlockSpec((V, H), lambda i: (0, 0),
                                      pipeline_mode=pl.Buffered(1))
        else:
            table_spec = pl.BlockSpec((V, H), lambda i: (0, 0))
        return pl.pallas_call(
            kernel,
            out_shape=jax.ShapeDtypeStruct((N_pad // n_groups, n_groups * H),
                                           emb_table.dtype),
            grid=(n_steps,),
            in_specs=[
                pl.BlockSpec((TG, n_groups), lambda i: (i, 0)),  # ids tile
                table_spec,                                      # full table
            ],
            out_specs=pl.BlockSpec((TG, n_groups * H), lambda i: (i, 0)),
            compiler_params=pltpu.CompilerParams(
                dimension_semantics=("parallel",),
                vmem_limit_bytes=vmem_limit,
            ),
        )

    try:
        out = make_call(True)(ids2, emb_table)
    except Exception:
        # Older JAX without BlockSpec pipeline_mode / Buffered(1) support.
        out = make_call(False)(ids2, emb_table)

    # (N_pad/G, G*H) has the same row-major layout as (N_pad, H): free reshape.
    return out.reshape(N_pad, H)[:N].reshape(B, L, H)


def _reference(x, emb_table):
    """Pure-JAX reference mirroring nn.Embedding forward: table[x]."""
    return emb_table[x]


if __name__ == "__main__":
    # Shapes implied by the module: batch=2, seq=8, hidden=32, num_items=50.
    B, L, H = 2, 8, 32
    num_items = 50
    vocab = num_items + 2                 # args.num_items + 2

    key = jax.random.PRNGKey(0)
    k_x, k_w = jax.random.split(key)

    x = jax.random.randint(k_x, (B, L), 0, vocab, dtype=jnp.int32)
    emb_table = (0.02 * jax.random.normal(k_w, (vocab, H))).astype(jnp.float32)
    emb_table = emb_table.at[0].set(0.0)  # padding_idx=0 row is zero at init

    out = jax.block_until_ready(token_embedding_direct(x, emb_table))

    ref = _reference(x, emb_table)
    assert out.shape == (B, L, H), out.shape
    assert jnp.allclose(out, ref, atol=1e-6), "mismatch vs. reference"

    print("KERNEL_OK")
</pallas_src>

<mosaic_0001>
module attributes {stable_mosaic.version = 11 : i64} {
  func.func @_embedding_gather_kernel(%arg0: i32, %arg1: memref<8x4xi32, #tpu.memory_space<vmem>>, %arg2: memref<52x32xf32, #tpu.memory_space<vmem>>, %arg3: memref<8x128xf32, #tpu.memory_space<vmem>>) attributes {dimension_semantics = [#tpu.dimension_semantics<parallel>], iteration_bounds = array<i64: 1>, scalar_prefetch = 0 : i64, scratch_operands = 0 : i64, tpu.core_type = #tpu.core_type<tc>, window_params = [{transform_indices = @transform_0, window_bounds = array<i64: 8, 4>}, {pipeline_mode = #tpu.pipeline_mode<synchronous>, transform_indices = @transform_1, window_bounds = array<i64: 52, 32>}, {transform_indices = @transform_2, window_bounds = array<i64: 8, 128>}]} {
    %c0 = arith.constant 0 : index
    %c0_0 = arith.constant 0 : index
    %0 = vector.load %arg1[%c0, %c0_0] : memref<8x4xi32, #tpu.memory_space<vmem>>, vector<8x4xi32>
    %c0_1 = arith.constant 0 : index
    %c0_2 = arith.constant 0 : index
    %1 = vector.load %arg2[%c0_1, %c0_2] : memref<52x32xf32, #tpu.memory_space<vmem>>, vector<52x32xf32>
    %2 = tpu.iota {dimensions = array<i32: 1>} : vector<8x52xi32>
    %3 = vector.extract_strided_slice %0 {offsets = [0, 0], sizes = [8, 1], strides = [1, 1]} : vector<8x4xi32> to vector<8x1xi32>
    %4 = vector.broadcast %3 : vector<8x1xi32> to vector<8x52xi32>
    %5 = arith.cmpi eq, %2, %4 : vector<8x52xi32>
    %6 = arith.extui %5 : vector<8x52xi1> to vector<8x52xi32>
    %7 = arith.sitofp %6 : vector<8x52xi32> to vector<8x52xf32>
    %cst = arith.constant dense<0.000000e+00> : vector<8x32xf32>
    %8 = tpu.matmul %7, %1, %cst {dimension_numbers = #tpu.dot_dimension_numbers<[1], [0], [0], [1], [0, 0, 1, 1], [], []>} : vector<8x52xf32>, vector<52x32xf32>, vector<8x32xf32> -> vector<8x32xf32>
    %c0_3 = arith.constant 0 : index
    %c0_4 = arith.constant 0 : index
    %9 = vector.load %arg3[%c0_3, %c0_4] : memref<8x128xf32, #tpu.memory_space<vmem>>, vector<8x32xf32>
    tpu.vector_store %arg3[%c0_3, %c0_4], %8 {strides = array<i32>} : memref<8x128xf32, #tpu.memory_space<vmem>>, vector<8x32xf32>,
    %10 = vector.extract_strided_slice %0 {offsets = [0, 1], sizes = [8, 1], strides = [1, 1]} : vector<8x4xi32> to vector<8x1xi32>
    %11 = vector.broadcast %10 : vector<8x1xi32> to vector<8x52xi32>
    %12 = arith.cmpi eq, %2, %11 : vector<8x52xi32>
    %13 = arith.extui %12 : vector<8x52xi1> to vector<8x52xi32>
    %14 = arith.sitofp %13 : vector<8x52xi32> to vector<8x52xf32>
    %cst_5 = arith.constant dense<0.000000e+00> : vector<8x32xf32>
    %15 = tpu.matmul %14, %1, %cst_5 {dimension_numbers = #tpu.dot_dimension_numbers<[1], [0], [0], [1], [0, 0, 1, 1], [], []>} : vector<8x52xf32>, vector<52x32xf32>, vector<8x32xf32> -> vector<8x32xf32>
    %c0_6 = arith.constant 0 : index
    %c32 = arith.constant 32 : index
    %16 = vector.load %arg3[%c0_6, %c32] : memref<8x128xf32, #tpu.memory_space<vmem>>, vector<8x32xf32>
    tpu.vector_store %arg3[%c0_6, %c32], %15 {strides = array<i32>} : memref<8x128xf32, #tpu.memory_space<vmem>>, vector<8x32xf32>,
    %17 = vector.extract_strided_slice %0 {offsets = [0, 2], sizes = [8, 1], strides = [1, 1]} : vector<8x4xi32> to vector<8x1xi32>
    %18 = vector.broadcast %17 : vector<8x1xi32> to vector<8x52xi32>
    %19 = arith.cmpi eq, %2, %18 : vector<8x52xi32>
    %20 = arith.extui %19 : vector<8x52xi1> to vector<8x52xi32>
    %21 = arith.sitofp %20 : vector<8x52xi32> to vector<8x52xf32>
    %cst_7 = arith.constant dense<0.000000e+00> : vector<8x32xf32>
    %22 = tpu.matmul %21, %1, %cst_7 {dimension_numbers = #tpu.dot_dimension_numbers<[1], [0], [0], [1], [0, 0, 1, 1], [], []>} : vector<8x52xf32>, vector<52x32xf32>, vector<8x32xf32> -> vector<8x32xf32>
    %c0_8 = arith.constant 0 : index
    %c64 = arith.constant 64 : index
    %23 = vector.load %arg3[%c0_8, %c64] : memref<8x128xf32, #tpu.memory_space<vmem>>, vector<8x32xf32>
    tpu.vector_store %arg3[%c0_8, %c64], %22 {strides = array<i32>} : memref<8x128xf32, #tpu.memory_space<vmem>>, vector<8x32xf32>,
    %24 = vector.extract_strided_slice %0 {offsets = [0, 3], sizes = [8, 1], strides = [1, 1]} : vector<8x4xi32> to vector<8x1xi32>
    %25 = vector.broadcast %24 : vector<8x1xi32> to vector<8x52xi32>
    %26 = arith.cmpi eq, %2, %25 : vector<8x52xi32>
    %27 = arith.extui %26 : vector<8x52xi1> to vector<8x52xi32>
    %28 = arith.sitofp %27 : vector<8x52xi32> to vector<8x52xf32>
    %cst_9 = arith.constant dense<0.000000e+00> : vector<8x32xf32>
    %29 = tpu.matmul %28, %1, %cst_9 {dimension_numbers = #tpu.dot_dimension_numbers<[1], [0], [0], [1], [0, 0, 1, 1], [], []>} : vector<8x52xf32>, vector<52x32xf32>, vector<8x32xf32> -> vector<8x32xf32>
    %c0_10 = arith.constant 0 : index
    %c96 = arith.constant 96 : index
    %30 = vector.load %arg3[%c0_10, %c96] : memref<8x128xf32, #tpu.memory_space<vmem>>, vector<8x32xf32>
    tpu.vector_store %arg3[%c0_10, %c96], %29 {strides = array<i32>} : memref<8x128xf32, #tpu.memory_space<vmem>>, vector<8x32xf32>,
    return
  }
  func.func @transform_0(%arg0: i32) -> (i32, i32) {
    %c0_i32 = arith.constant 0 : i32
    %c0_i32_0 = arith.constant 0 : i32
    return %arg0, %c0_i32 : i32, i32
  }
  func.func @transform_1(%arg0: i32) -> (i32, i32) {
    %c0_i32 = arith.constant 0 : i32
    %c0_i32_0 = arith.constant 0 : i32
    %c0_i32_1 = arith.constant 0 : i32
    return %c0_i32, %c0_i32_0 : i32, i32
  }
  func.func @transform_2(%arg0: i32) -> (i32, i32) {
    %c0_i32 = arith.constant 0 : i32
    %c0_i32_0 = arith.constant 0 : i32
    return %arg0, %c0_i32 : i32, i32
  }
}

module attributes {stable_mosaic.version = 11 : i64} {
  func.func @_embedding_gather_kernel(%arg0: i32, %arg1: memref<8x4xi32, #tpu.memory_space<vmem>>, %arg2: memref<52x32xf32, #tpu.memory_space<vmem>>, %arg3: memref<8x128xf32, #tpu.memory_space<vmem>>) attributes {dimension_semantics = [#tpu.dimension_semantics<parallel>], iteration_bounds = array<i64: 1>, scalar_prefetch = 0 : i64, scratch_operands = 0 : i64, tpu.core_type = #tpu.core_type<tc>, window_params = [{transform_indices = @transform_0, window_bounds = array<i64: 8, 4>}, {pipeline_mode = #tpu.pipeline_mode<synchronous>, transform_indices = @transform_1, window_bounds = array<i64: 52, 32>}, {transform_indices = @transform_2, window_bounds = array<i64: 8, 128>}]} {
    %c0 = arith.constant 0 : index
    %c0_0 = arith.constant 0 : index
    %0 = vector.load %arg1[%c0, %c0_0] : memref<8x4xi32, #tpu.memory_space<vmem>>, vector<8x4xi32>
    %c0_1 = arith.constant 0 : index
    %c0_2 = arith.constant 0 : index
    %1 = vector.load %arg2[%c0_1, %c0_2] : memref<52x32xf32, #tpu.memory_space<vmem>>, vector<52x32xf32>
    %2 = tpu.iota {dimensions = array<i32: 1>} : vector<8x52xi32>
    %3 = vector.extract_strided_slice %0 {offsets = [0, 0], sizes = [8, 1], strides = [1, 1]} : vector<8x4xi32> to vector<8x1xi32>
    %4 = vector.broadcast %3 : vector<8x1xi32> to vector<8x52xi32>
    %5 = arith.cmpi eq, %2, %4 : vector<8x52xi32>
    %6 = arith.extui %5 : vector<8x52xi1> to vector<8x52xi32>
    %7 = arith.sitofp %6 : vector<8x52xi32> to vector<8x52xf32>
    %cst = arith.constant dense<0.000000e+00> : vector<8x32xf32>
    %8 = tpu.matmul %7, %1, %cst {dimension_numbers = #tpu.dot_dimension_numbers<[1], [0], [0], [1], [0, 0, 1, 1], [], []>} : vector<8x52xf32>, vector<52x32xf32>, vector<8x32xf32> -> vector<8x32xf32>
    %c0_3 = arith.constant 0 : index
    %c0_4 = arith.constant 0 : index
    %9 = vector.load %arg3[%c0_3, %c0_4] : memref<8x128xf32, #tpu.memory_space<vmem>>, vector<8x32xf32>
    tpu.vector_store %arg3[%c0_3, %c0_4], %8 {strides = array<i32>} : memref<8x128xf32, #tpu.memory_space<vmem>>, vector<8x32xf32>,
    %10 = vector.extract_strided_slice %0 {offsets = [0, 1], sizes = [8, 1], strides = [1, 1]} : vector<8x4xi32> to vector<8x1xi32>
    %11 = vector.broadcast %10 : vector<8x1xi32> to vector<8x52xi32>
    %12 = arith.cmpi eq, %2, %11 : vector<8x52xi32>
    %13 = arith.extui %12 : vector<8x52xi1> to vector<8x52xi32>
    %14 = arith.sitofp %13 : vector<8x52xi32> to vector<8x52xf32>
    %cst_5 = arith.constant dense<0.000000e+00> : vector<8x32xf32>
    %15 = tpu.matmul %14, %1, %cst_5 {dimension_numbers = #tpu.dot_dimension_numbers<[1], [0], [0], [1], [0, 0, 1, 1], [], []>} : vector<8x52xf32>, vector<52x32xf32>, vector<8x32xf32> -> vector<8x32xf32>
    %c0_6 = arith.constant 0 : index
    %c32 = arith.constant 32 : index
    %16 = vector.load %arg3[%c0_6, %c32] : memref<8x128xf32, #tpu.memory_space<vmem>>, vector<8x32xf32>
    tpu.vector_store %arg3[%c0_6, %c32], %15 {strides = array<i32>} : memref<8x128xf32, #tpu.memory_space<vmem>>, vector<8x32xf32>,
    %17 = vector.extract_strided_slice %0 {offsets = [0, 2], sizes = [8, 1], strides = [1, 1]} : vector<8x4xi32> to vector<8x1xi32>
    %18 = vector.broadcast %17 : vector<8x1xi32> to vector<8x52xi32>
    %19 = arith.cmpi eq, %2, %18 : vector<8x52xi32>
    %20 = arith.extui %19 : vector<8x52xi1> to vector<8x52xi32>
    %21 = arith.sitofp %20 : vector<8x52xi32> to vector<8x52xf32>
    %cst_7 = arith.constant dense<0.000000e+00> : vector<8x32xf32>
    %22 = tpu.matmul %21, %1, %cst_7 {dimension_numbers = #tpu.dot_dimension_numbers<[1], [0], [0], [1], [0, 0, 1, 1], [], []>} : vector<8x52xf32>, vector<52x32xf32>, vector<8x32xf32> -> vector<8x32xf32>
    %c0_8 = arith.constant 0 : index
    %c64 = arith.constant 64 : index
    %23 = vector.load %arg3[%c0_8, %c64] : memref<8x128xf32, #tpu.memory_space<vmem>>, vector<8x32xf32>
    tpu.vector_store %arg3[%c0_8, %c64], %22 {strides = array<i32>} : memref<8x128xf32, #tpu.memory_space<vmem>>, vector<8x32xf32>,
    %24 = vector.extract_strided_slice %0 {offsets = [0, 3], sizes = [8, 1], strides = [1, 1]} : vector<8x4xi32> to vector<8x1xi32>
    %25 = vector.broadcast %24 : vector<8x1xi32> to vector<8x52xi32>
    %26 = arith.cmpi eq, %2, %25 : vector<8x52xi32>
    %27 = arith.extui %26 : vector<8x52xi1> to vector<8x52xi32>
    %28 = arith.sitofp %27 : vector<8x52xi32> to vector<8x52xf32>
    %cst_9 = arith.constant dense<0.000000e+00> : vector<8x32xf32>
    %29 = tpu.matmul %28, %1, %cst_9 {dimension_numbers = #tpu.dot_dimension_numbers<[1], [0], [0], [1], [0, 0, 1, 1], [], []>} : vector<8x52xf32>, vector<52x32xf32>, vector<8x32xf32> -> vector<8x32xf32>
    %c0_10 = arith.constant 0 : index
    %c96 = arith.constant 96 : index
    %30 = vector.load %arg3[%c0_10, %c96] : memref<8x128xf32, #tpu.memory_space<vmem>>, vector<8x32xf32>
    tpu.vector_store %arg3[%c0_10, %c96], %29 {strides = array<i32>} : memref<8x128xf32, #tpu.memory_space<vmem>>, vector<8x32xf32>,
    return
  }
  func.func @transform_0(%arg0: i32) -> (i32, i32) {
    %c0_i32 = arith.constant 0 : i32
    %c0_i32_0 = arith.constant 0 : i32
    return %arg0, %c0_i32 : i32, i32
  }
  func.func @transform_1(%arg0: i32) -> (i32, i32) {
    %c0_i32 = arith.constant 0 : i32
    %c0_i32_0 = arith.constant 0 : i32
    %c0_i32_1 = arith.constant 0 : i32
    return %c0_i32, %c0_i32_0 : i32, i32
  }
  func.func @transform_2(%arg0: i32) -> (i32, i32) {
    %c0_i32 = arith.constant 0 : i32
    %c0_i32_0 = arith.constant 0 : i32
    return %arg0, %c0_i32 : i32, i32
  }
}

</mosaic_0001>

<llo_original>
// kernel: tpu_custom_call.1
$region0: #{tpu_custom_call.1}
  #allocation0 [shape = 'u32[]', space=smem, size = 0x4, offset = 0x4, fixed_abs, tag = 'smem constant byte address 0x4 - core index']
  #allocation1 [shape = 'u32[144,128]{1,0:T(1,128)}', space=vmem, size = 0x12000, scoped, tag = 'internal scratch']
  %s0 = inlined_call_operand.vmem [shape: s32[8,4], index: 0, kind: input, shape index: {}]
  %s1 = inlined_call_operand.vmem [shape: f32[52,32], index: 1, kind: input, shape index: {}]
  %s2 = inlined_call_operand.hbm [shape: f32[8,128], index: 2, kind: output, shape index: {}]
  %s3 = sld [smem:[#allocation0]]
  $region18: #{tpu_custom_call.1} parent=0
    _
  %s5 = ssub.s32 1, %s3
  %s6 = scalar_select 0, %s5, %s3
  $region1: #{tpu_custom_call.1} parent=0
    #allocation2 [shape = 'u8[4096]{0}', space=vmem, size = 0x1000, scoped, tag = 'output window, operand 0, single buffered']
    #allocation3 [shape = 's32[1]{0}', space=sflag, size = 0x4, scoped, tag = 'scoped memory for tpu_custom_call.1']
    %7 = vsyncpa [#allocation3], 0
    // Predicated region
    $region2: #{tpu_custom_call.1} parent=1 // pred_check
      _
    $region3: #{tpu_custom_call.1} parent=1 // pred_check_branch
      %9 = sbr.rel (0) target = $region5
    $region4: #{tpu_custom_call.1} parent=1 // pred_region
      _
    $region5: #{tpu_custom_call.1} parent=1 // pred_fallthru
      _
    // Predicated region
    $region6: #{tpu_custom_call.1} parent=1 // pred_check
      _
    $region7: #{tpu_custom_call.1} parent=1 // pred_check_branch
      %11 = sbr.rel (0) target = $region9
    $region8: #{tpu_custom_call.1} parent=1 // pred_region
      _
    $region9: #{tpu_custom_call.1} parent=1 // pred_fallthru
      _
    %v12 = vld [vmem:[%s0] sm:$0xff]
    %v13 = vld [vmem:[%s1] sm:$0xff]
    %v14 = vld [vmem:[%s1 + $0x8] sm:$0xff]
    %v15 = vld [vmem:[%s1 + $0x10] sm:$0xff]
    %v16 = vld [vmem:[%s1 + $0x18] sm:$0xff]
    %v17 = vld [vmem:[%s1 + $0x20] sm:$0xff]
    %v18 = vld [vmem:[%s1 + $0x28] sm:$0xff]
    %v19 = vld [vmem:[%s1 + $0x30] sm:$0xf]
    %v20 = vlaneseq
    %v21 = vand.u32 %v20, 127
    %22 = vset.pattern.permute.xlu0 0
    %23 = vperm.xlu0 %22, %v12
    %v24 = vpop.permute.xlu0 %23
    %vm25 = vcmp.eq.s32.totalorder %v21, %v24
    %v26 = vsel %vm25, 1, 0
    %v27 = vcvt.s32.f32 %v26
    %vm28 = vcmask 424960
    %v30 = vsel %vm28, %v27, 0
    %vm32 = vcmask 1043456
    %v34 = vsel %vm32, %v19, 0
    %36 = vmatprep.subr.mxu0 0.0
    %37 = vmatpush1.msra.mxu0 %v13
    %38 = vmatprep.subr.mxu0 0.0
    %39 = vmatpush1.msra.mxu0 %v14
    %40 = vmatprep.subr.mxu0 0.0
    %41 = vmatpush1.msra.mxu0 %v15
    %42 = vmatprep.subr.mxu0 0.0
    %43 = vmatpush1.msra.mxu0 %v16
    %44 = vmatprep.subr.mxu0 0.0
    %45 = vmatpush1.msra.mxu0 %v17
    %46 = vmatprep.subr.mxu0 0.0
    %47 = vmatpush1.msra.mxu0 %v18
    %48 = vmatprep.subr.mxu0 0.0
    %49 = vmatpush1.msra.mxu0 %v34
    %50 = vmatprep.subr.mxu0 0.0
    %51 = vmatpush1.msra.mxu0 0.0
    %52 = vmatprep.subr.mxu0 0.0
    %53 = vmatpush1.msra.mxu0 0.0
    %54 = vmatprep.subr.mxu0 0.0
    %55 = vmatpush1.msra.mxu0 0.0
    %56 = vmatprep.subr.mxu0 0.0
    %57 = vmatpush1.msra.mxu0 0.0
    %58 = vmatprep.subr.mxu0 0.0
    %59 = vmatpush1.msra.mxu0 0.0
    %60 = vmatprep.subr.mxu0 0.0
    %61 = vmatpush1.msra.mxu0 0.0
    %62 = vmatprep.subr.mxu0 0.0
    %63 = vmatpush1.msra.mxu0 0.0
    %64 = vmatprep.subr.mxu0 0.0
    %65 = vmatpush1.msra.mxu0 0.0
    %66 = vmatprep.subr.mxu0 0.0
    %67 = vmatpush1.msra.mxu0 0.0
    %68 = vmatprep.subr.mxu0 0.0
    %69 = vmatpush1.msra.mxu0 0.0
    %70 = vmatprep.subr.mxu0 0.0
    %71 = vmatpush1.msra.mxu0 0.0
    %72 = vmatprep.subr.mxu0 0.0
    %73 = vmatpush1.msra.mxu0 0.0
    %74 = vmatprep.subr.mxu0 0.0
    %75 = vmatpush1.msra.mxu0 0.0
    %76 = vmatprep.subr.mxu0 0.0
    %77 = vmatpush1.msra.mxu0 0.0
    %78 = vmatprep.subr.mxu0 0.0
    %79 = vmatpush1.msra.mxu0 0.0
    %80 = vmatprep.subr.mxu0 0.0
    %81 = vmatpush1.msra.mxu0 0.0
    %82 = vmatprep.subr.mxu0 0.0
    %83 = vmatpush1.msra.mxu0 0.0
    %84 = vmatprep.subr.mxu0 0.0
    %85 = vmatpush1.msra.mxu0 0.0
    %86 = vmatprep.subr.mxu0 0.0
    %87 = vmatpush1.msra.mxu0 0.0
    %88 = vmatprep.subr.mxu0 0.0
    %89 = vmatpush1.msra.mxu0 0.0
    %90 = vmatprep.subr.mxu0 0.0
    %91 = vmatpush1.msra.mxu0 0.0
    %92 = vmatprep.subr.mxu0 0.0
    %93 = vmatpush1.msra.mxu0 0.0
    %94 = vmatprep.subr.mxu0 0.0
    %95 = vmatpush1.msra.mxu0 0.0
    %96 = vmatprep.subr.mxu0 0.0
    %97 = vmatpush1.msra.mxu0 0.0
    %98 = vmatprep.subr.mxu0 0.0
    %99 = vmatpush1.msra.mxu0 0.0
    %100 = vmatprep.mubr.f32.mxu0 0.0
    %101 = vmatmul.mubr.f32.gmra.mrb[0].mxu0 %v30
    %v102 = vpop.f32.mrb[0].mxu0
    %v103 = vadd.f32 0.0, %v102
    %v104 = vpop.f32.mrb[0].mxu0
    %105 = vdwg.mxu0
    %vm106 = vcmask 261120
    %107 = vst.msk [vmem:[#allocation2] sm:$0xff] %vm106, %v103
    %108 = vset.pattern.permute.xlu0 1
    %109 = vperm.xlu0 %108, %v12
    %v110 = vpop.permute.xlu0 %109
    %vm111 = vcmp.eq.s32.totalorder %v21, %v110
    %v112 = vsel %vm111, 1, 0
    %v113 = vcvt.s32.f32 %v112
    %v115 = vsel %vm28, %v113, 0
    %117 = vmatprep.subr.mxu0 0.0
    %118 = vmatpush1.msra.mxu0 %v13
    %119 = vmatprep.subr.mxu0 0.0
    %120 = vmatpush1.msra.mxu0 %v14
    %121 = vmatprep.subr.mxu0 0.0
    %122 = vmatpush1.msra.mxu0 %v15
    %123 = vmatprep.subr.mxu0 0.0
    %124 = vmatpush1.msra.mxu0 %v16
    %125 = vmatprep.subr.mxu0 0.0
    %126 = vmatpush1.msra.mxu0 %v17
    %127 = vmatprep.subr.mxu0 0.0
    %128 = vmatpush1.msra.mxu0 %v18
    %129 = vmatprep.subr.mxu0 0.0
    %130 = vmatpush1.msra.mxu0 %v34
    %131 = vmatprep.subr.mxu0 0.0
    %132 = vmatpush1.msra.mxu0 0.0
    %133 = vmatprep.subr.mxu0 0.0
    %134 = vmatpush1.msra.mxu0 0.0
    %135 = vmatprep.subr.mxu0 0.0
    %136 = vmatpush1.msra.mxu0 0.0
    %137 = vmatprep.subr.mxu0 0.0
    %138 = vmatpush1.msra.mxu0 0.0
    %139 = vmatprep.subr.mxu0 0.0
    %140 = vmatpush1.msra.mxu0 0.0
    %141 = vmatprep.subr.mxu0 0.0
    %142 = vmatpush1.msra.mxu0 0.0
    %143 = vmatprep.subr.mxu0 0.0
    %144 = vmatpush1.msra.mxu0 0.0
    %145 = vmatprep.subr.mxu0 0.0
    %146 = vmatpush1.msra.mxu0 0.0
    %147 = vmatprep.subr.mxu0 0.0
    %148 = vmatpush1.msra.mxu0 0.0
    %149 = vmatprep.subr.mxu0 0.0
    %150 = vmatpush1.msra.mxu0 0.0
    %151 = vmatprep.subr.mxu0 0.0
    %152 = vmatpush1.msra.mxu0 0.0
    %153 = vmatprep.subr.mxu0 0.0
    %154 = vmatpush1.msra.mxu0 0.0
    %155 = vmatprep.subr.mxu0 0.0
    %156 = vmatpush1.msra.mxu0 0.0
    %157 = vmatprep.subr.mxu0 0.0
    %158 = vmatpush1.msra.mxu0 0.0
    %159 = vmatprep.subr.mxu0 0.0
    %160 = vmatpush1.msra.mxu0 0.0
    %161 = vmatprep.subr.mxu0 0.0
    %162 = vmatpush1.msra.mxu0 0.0
    %163 = vmatprep.subr.mxu0 0.0
    %164 = vmatpush1.msra.mxu0 0.0
    %165 = vmatprep.subr.mxu0 0.0
    %166 = vmatpush1.msra.mxu0 0.0
    %167 = vmatprep.subr.mxu0 0.0
    %168 = vmatpush1.msra.mxu0 0.0
    %169 = vmatprep.subr.mxu0 0.0
    %170 = vmatpush1.msra.mxu0 0.0
    %171 = vmatprep.subr.mxu0 0.0
    %172 = vmatpush1.msra.mxu0 0.0
    %173 = vmatprep.subr.mxu0 0.0
    %174 = vmatpush1.msra.mxu0 0.0
    %175 = vmatprep.subr.mxu0 0.0
    %176 = vmatpush1.msra.mxu0 0.0
    %177 = vmatprep.subr.mxu0 0.0
    %178 = vmatpush1.msra.mxu0 0.0
    %179 = vmatprep.subr.mxu0 0.0
    %180 = vmatpush1.msra.mxu0 0.0
    %181 = vmatprep.mubr.f32.mxu0 0.0
    %182 = vmatmul.mubr.f32.gmra.mrb[0].mxu0 %v115
    %v183 = vpop.f32.mrb[0].mxu0
    %v184 = vadd.f32 0.0, %v183
    %v185 = vpop.f32.mrb[0].mxu0
    %186 = vdwg.mxu0
    %188 = vrot.lane.b32.xlu0 %v184, 32
    %v189 = vpop.permute.xlu0 %188
    %vm191 = vcmask 523520
    %192 = vst.msk [vmem:[#allocation2] sm:$0xff] %vm191, %v189
    %193 = vset.pattern.permute.xlu0 2
    %194 = vperm.xlu0 %193, %v12
    %v195 = vpop.permute.xlu0 %194
    %vm196 = vcmp.eq.s32.totalorder %v21, %v195
    %v197 = vsel %vm196, 1, 0
    %v198 = vcvt.s32.f32 %v197
    %v200 = vsel %vm28, %v198, 0
    %202 = vmatprep.subr.mxu0 0.0
    %203 = vmatpush1.msra.mxu0 %v13
    %204 = vmatprep.subr.mxu0 0.0
    %205 = vmatpush1.msra.mxu0 %v14
    %206 = vmatprep.subr.mxu0 0.0
    %207 = vmatpush1.msra.mxu0 %v15
    %208 = vmatprep.subr.mxu0 0.0
    %209 = vmatpush1.msra.mxu0 %v16
    %210 = vmatprep.subr.mxu0 0.0
    %211 = vmatpush1.msra.mxu0 %v17
    %212 = vmatprep.subr.mxu0 0.0
    %213 = vmatpush1.msra.mxu0 %v18
    %214 = vmatprep.subr.mxu0 0.0
    %215 = vmatpush1.msra.mxu0 %v34
    %216 = vmatprep.subr.mxu0 0.0
    %217 = vmatpush1.msra.mxu0 0.0
    %218 = vmatprep.subr.mxu0 0.0
    %219 = vmatpush1.msra.mxu0 0.0
    %220 = vmatprep.subr.mxu0 0.0
    %221 = vmatpush1.msra.mxu0 0.0
    %222 = vmatprep.subr.mxu0 0.0
    %223 = vmatpush1.msra.mxu0 0.0
    %224 = vmatprep.subr.mxu0 0.0
    %225 = vmatpush1.msra.mxu0 0.0
    %226 = vmatprep.subr.mxu0 0.0
    %227 = vmatpush1.msra.mxu0 0.0
    %228 = vmatprep.subr.mxu0 0.0
    %229 = vmatpush1.msra.mxu0 0.0
    %230 = vmatprep.subr.mxu0 0.0
    %231 = vmatpush1.msra.mxu0 0.0
    %232 = vmatprep.subr.mxu0 0.0
    %233 = vmatpush1.msra.mxu0 0.0
    %234 = vmatprep.subr.mxu0 0.0
    %235 = vmatpush1.msra.mxu0 0.0
    %236 = vmatprep.subr.mxu0 0.0
    %237 = vmatpush1.msra.mxu0 0.0
    %238 = vmatprep.subr.mxu0 0.0
    %239 = vmatpush1.msra.mxu0 0.0
    %240 = vmatprep.subr.mxu0 0.0
    %241 = vmatpush1.msra.mxu0 0.0
    %242 = vmatprep.subr.mxu0 0.0
    %243 = vmatpush1.msra.mxu0 0.0
    %244 = vmatprep.subr.mxu0 0.0
    %245 = vmatpush1.msra.mxu0 0.0
    %246 = vmatprep.subr.mxu0 0.0
    %247 = vmatpush1.msra.mxu0 0.0
    %248 = vmatprep.subr.mxu0 0.0
    %249 = vmatpush1.msra.mxu0 0.0
    %250 = vmatprep.subr.mxu0 0.0
    %251 = vmatpush1.msra.mxu0 0.0
    %252 = vmatprep.subr.mxu0 0.0
    %253 = vmatpush1.msra.mxu0 0.0
    %254 = vmatprep.subr.mxu0 0.0
    %255 = vmatpush1.msra.mxu0 0.0
    %256 = vmatprep.subr.mxu0 0.0
    %257 = vmatpush1.msra.mxu0 0.0
    %258 = vmatprep.subr.mxu0 0.0
    %259 = vmatpush1.msra.mxu0 0.0
    %260 = vmatprep.subr.mxu0 0.0
    %261 = vmatpush1.msra.mxu0 0.0
    %262 = vmatprep.subr.mxu0 0.0
    %263 = vmatpush1.msra.mxu0 0.0
    %264 = vmatprep.subr.mxu0 0.0
    %265 = vmatpush1.msra.mxu0 0.0
    %266 = vmatprep.mubr.f32.mxu0 0.0
    %267 = vmatmul.mubr.f32.gmra.mrb[0].mxu0 %v200
    %v268 = vpop.f32.mrb[0].mxu0
    %v269 = vadd.f32 0.0, %v268
    %v270 = vpop.f32.mrb[0].mxu0
    %271 = vdwg.mxu0
    %273 = vrot.lane.b32.xlu0 %v269, 64
    %v274 = vpop.permute.xlu0 %273
    %vm276 = vcmask 785920
    %277 = vst.msk [vmem:[#allocation2] sm:$0xff] %vm276, %v274
    %278 = vset.pattern.permute.xlu0 3
    %279 = vperm.xlu0 %278, %v12
    %v280 = vpop.permute.xlu0 %279
    %vm281 = vcmp.eq.s32.totalorder %v21, %v280
    %v282 = vsel %vm281, 1, 0
    %v283 = vcvt.s32.f32 %v282
    %v285 = vsel %vm28, %v283, 0
    %287 = vmatprep.subr.mxu0 0.0
    %288 = vmatpush1.msra.mxu0 %v13
    %289 = vmatprep.subr.mxu0 0.0
    %290 = vmatpush1.msra.mxu0 %v14
    %291 = vmatprep.subr.mxu0 0.0
    %292 = vmatpush1.msra.mxu0 %v15
    %293 = vmatprep.subr.mxu0 0.0
    %294 = vmatpush1.msra.mxu0 %v16
    %295 = vmatprep.subr.mxu0 0.0
    %296 = vmatpush1.msra.mxu0 %v17
    %297 = vmatprep.subr.mxu0 0.0
    %298 = vmatpush1.msra.mxu0 %v18
    %299 = vmatprep.subr.mxu0 0.0
    %300 = vmatpush1.msra.mxu0 %v34
    %301 = vmatprep.subr.mxu0 0.0
    %302 = vmatpush1.msra.mxu0 0.0
    %303 = vmatprep.subr.mxu0 0.0
    %304 = vmatpush1.msra.mxu0 0.0
    %305 = vmatprep.subr.mxu0 0.0
    %306 = vmatpush1.msra.mxu0 0.0
    %307 = vmatprep.subr.mxu0 0.0
    %308 = vmatpush1.msra.mxu0 0.0
    %309 = vmatprep.subr.mxu0 0.0
    %310 = vmatpush1.msra.mxu0 0.0
    %311 = vmatprep.subr.mxu0 0.0
    %312 = vmatpush1.msra.mxu0 0.0
    %313 = vmatprep.subr.mxu0 0.0
    %314 = vmatpush1.msra.mxu0 0.0
    %315 = vmatprep.subr.mxu0 0.0
    %316 = vmatpush1.msra.mxu0 0.0
    %317 = vmatprep.subr.mxu0 0.0
    %318 = vmatpush1.msra.mxu0 0.0
    %319 = vmatprep.subr.mxu0 0.0
    %320 = vmatpush1.msra.mxu0 0.0
    %321 = vmatprep.subr.mxu0 0.0
    %322 = vmatpush1.msra.mxu0 0.0
    %323 = vmatprep.subr.mxu0 0.0
    %324 = vmatpush1.msra.mxu0 0.0
    %325 = vmatprep.subr.mxu0 0.0
    %326 = vmatpush1.msra.mxu0 0.0
    %327 = vmatprep.subr.mxu0 0.0
    %328 = vmatpush1.msra.mxu0 0.0
    %329 = vmatprep.subr.mxu0 0.0
    %330 = vmatpush1.msra.mxu0 0.0
    %331 = vmatprep.subr.mxu0 0.0
    %332 = vmatpush1.msra.mxu0 0.0
    %333 = vmatprep.subr.mxu0 0.0
    %334 = vmatpush1.msra.mxu0 0.0
    %335 = vmatprep.subr.mxu0 0.0
    %336 = vmatpush1.msra.mxu0 0.0
    %337 = vmatprep.subr.mxu0 0.0
    %338 = vmatpush1.msra.mxu0 0.0
    %339 = vmatprep.subr.mxu0 0.0
    %340 = vmatpush1.msra.mxu0 0.0
    %341 = vmatprep.subr.mxu0 0.0
    %342 = vmatpush1.msra.mxu0 0.0
    %343 = vmatprep.subr.mxu0 0.0
    %344 = vmatpush1.msra.mxu0 0.0
    %345 = vmatprep.subr.mxu0 0.0
    %346 = vmatpush1.msra.mxu0 0.0
    %347 = vmatprep.subr.mxu0 0.0
    %348 = vmatpush1.msra.mxu0 0.0
    %349 = vmatprep.subr.mxu0 0.0
    %350 = vmatpush1.msra.mxu0 0.0
    %351 = vmatprep.mubr.f32.mxu0 0.0
    %352 = vmatmul.mubr.f32.gmra.mrb[0].mxu0 %v285
    %v353 = vpop.f32.mrb[0].mxu0
    %v354 = vadd.f32 0.0, %v353
    %v355 = vpop.f32.mrb[0].mxu0
    %356 = vdwg.mxu0
    %358 = vrot.lane.b32.xlu0 %v354, 96
    %v359 = vpop.permute.xlu0 %358
    %vm361 = vcmask 1048320
    %362 = vst.msk [vmem:[#allocation2] sm:$0xff] %vm361, %v359
    // Predicated region
    $region10: #{tpu_custom_call.1} parent=1 // pred_check
      _
    $region11: #{tpu_custom_call.1} parent=1 // pred_check_branch
      %364 = sbr.rel (0) target = $region13
    $region12: #{tpu_custom_call.1} parent=1 // pred_region
      %s366 = ssub.s32 128, 128
      %367 = vsyncadd [#allocation3], %s366
      %s369 = sshll.u32 [#allocation2], 4
      %s370 = int_to_ptr.vmem [resolvable:$true] %s369
      %372 = dma.vmem_to_hbm [thread:$0]  %s370, 128, %s2, [#allocation3]
    $region13: #{tpu_custom_call.1} parent=1 // pred_fallthru
      _
    // Predicated region
    $region14: #{tpu_custom_call.1} parent=1 // pred_check
      _
    $region15: #{tpu_custom_call.1} parent=1 // pred_check_branch
      %374 = sbr.rel (0) target = $region17
    $region16: #{tpu_custom_call.1} parent=1 // pred_region
      %375 = dma.done [#allocation3], 128
    $region17: #{tpu_custom_call.1} parent=1 // pred_fallthru
      _
    %376 = vsyncpa [#allocation3], 1

// kernel: tpu_custom_call.1
$region0: #{tpu_custom_call.1}
  #allocation0 [shape = 'u32[]', space=smem, size = 0x4, offset = 0x4, fixed_abs, tag = 'smem constant byte address 0x4 - core index']
  #allocation1 [shape = 'u32[144,128]{1,0:T(1,128)}', space=vmem, size = 0x12000, scoped, tag = 'internal scratch']
  %s0 = inlined_call_operand.vmem [shape: s32[8,4], index: 0, kind: input, shape index: {}]
  %s1 = inlined_call_operand.vmem [shape: f32[52,32], index: 1, kind: input, shape index: {}]
  %s2 = inlined_call_operand.hbm [shape: f32[8,128], index: 2, kind: output, shape index: {}]
  %s3 = sld [smem:[#allocation0]]
  $region18: #{tpu_custom_call.1} parent=0
    _
  %s5 = ssub.s32 1, %s3
  %s6 = scalar_select 0, %s5, %s3
  $region1: #{tpu_custom_call.1} parent=0
    #allocation2 [shape = 'u8[4096]{0}', space=vmem, size = 0x1000, scoped, tag = 'output window, operand 0, single buffered']
    #allocation3 [shape = 's32[1]{0}', space=sflag, size = 0x4, scoped, tag = 'scoped memory for tpu_custom_call.1']
    %7 = vsyncpa [#allocation3], 0
    // Predicated region
    $region2: #{tpu_custom_call.1} parent=1 // pred_check
      _
    $region3: #{tpu_custom_call.1} parent=1 // pred_check_branch
      %9 = sbr.rel (0) target = $region5
    $region4: #{tpu_custom_call.1} parent=1 // pred_region
      _
    $region5: #{tpu_custom_call.1} parent=1 // pred_fallthru
      _
    // Predicated region
    $region6: #{tpu_custom_call.1} parent=1 // pred_check
      _
    $region7: #{tpu_custom_call.1} parent=1 // pred_check_branch
      %11 = sbr.rel (0) target = $region9
    $region8: #{tpu_custom_call.1} parent=1 // pred_region
      _
    $region9: #{tpu_custom_call.1} parent=1 // pred_fallthru
      _
    %v12 = vld [vmem:[%s0] sm:$0xff]
    %v13 = vld [vmem:[%s1] sm:$0xff]
    %v14 = vld [vmem:[%s1 + $0x8] sm:$0xff]
    %v15 = vld [vmem:[%s1 + $0x10] sm:$0xff]
    %v16 = vld [vmem:[%s1 + $0x18] sm:$0xff]
    %v17 = vld [vmem:[%s1 + $0x20] sm:$0xff]
    %v18 = vld [vmem:[%s1 + $0x28] sm:$0xff]
    %v19 = vld [vmem:[%s1 + $0x30] sm:$0xf]
    %v20 = vlaneseq
    %v21 = vand.u32 %v20, 127
    %22 = vset.pattern.permute.xlu0 0
    %23 = vperm.xlu0 %22, %v12
    %v24 = vpop.permute.xlu0 %23
    %vm25 = vcmp.eq.s32.totalorder %v21, %v24
    %v26 = vsel %vm25, 1, 0
    %v27 = vcvt.s32.f32 %v26
    %vm28 = vcmask 424960
    %v30 = vsel %vm28, %v27, 0
    %vm32 = vcmask 1043456
    %v34 = vsel %vm32, %v19, 0
    %36 = vmatprep.subr.mxu0 0.0
    %37 = vmatpush1.msra.mxu0 %v13
    %38 = vmatprep.subr.mxu0 0.0
    %39 = vmatpush1.msra.mxu0 %v14
    %40 = vmatprep.subr.mxu0 0.0
    %41 = vmatpush1.msra.mxu0 %v15
    %42 = vmatprep.subr.mxu0 0.0
    %43 = vmatpush1.msra.mxu0 %v16
    %44 = vmatprep.subr.mxu0 0.0
    %45 = vmatpush1.msra.mxu0 %v17
    %46 = vmatprep.subr.mxu0 0.0
    %47 = vmatpush1.msra.mxu0 %v18
    %48 = vmatprep.subr.mxu0 0.0
    %49 = vmatpush1.msra.mxu0 %v34
    %50 = vmatprep.subr.mxu0 0.0
    %51 = vmatpush1.msra.mxu0 0.0
    %52 = vmatprep.subr.mxu0 0.0
    %53 = vmatpush1.msra.mxu0 0.0
    %54 = vmatprep.subr.mxu0 0.0
    %55 = vmatpush1.msra.mxu0 0.0
    %56 = vmatprep.subr.mxu0 0.0
    %57 = vmatpush1.msra.mxu0 0.0
    %58 = vmatprep.subr.mxu0 0.0
    %59 = vmatpush1.msra.mxu0 0.0
    %60 = vmatprep.subr.mxu0 0.0
    %61 = vmatpush1.msra.mxu0 0.0
    %62 = vmatprep.subr.mxu0 0.0
    %63 = vmatpush1.msra.mxu0 0.0
    %64 = vmatprep.subr.mxu0 0.0
    %65 = vmatpush1.msra.mxu0 0.0
    %66 = vmatprep.subr.mxu0 0.0
    %67 = vmatpush1.msra.mxu0 0.0
    %68 = vmatprep.subr.mxu0 0.0
    %69 = vmatpush1.msra.mxu0 0.0
    %70 = vmatprep.subr.mxu0 0.0
    %71 = vmatpush1.msra.mxu0 0.0
    %72 = vmatprep.subr.mxu0 0.0
    %73 = vmatpush1.msra.mxu0 0.0
    %74 = vmatprep.subr.mxu0 0.0
    %75 = vmatpush1.msra.mxu0 0.0
    %76 = vmatprep.subr.mxu0 0.0
    %77 = vmatpush1.msra.mxu0 0.0
    %78 = vmatprep.subr.mxu0 0.0
    %79 = vmatpush1.msra.mxu0 0.0
    %80 = vmatprep.subr.mxu0 0.0
    %81 = vmatpush1.msra.mxu0 0.0
    %82 = vmatprep.subr.mxu0 0.0
    %83 = vmatpush1.msra.mxu0 0.0
    %84 = vmatprep.subr.mxu0 0.0
    %85 = vmatpush1.msra.mxu0 0.0
    %86 = vmatprep.subr.mxu0 0.0
    %87 = vmatpush1.msra.mxu0 0.0
    %88 = vmatprep.subr.mxu0 0.0
    %89 = vmatpush1.msra.mxu0 0.0
    %90 = vmatprep.subr.mxu0 0.0
    %91 = vmatpush1.msra.mxu0 0.0
    %92 = vmatprep.subr.mxu0 0.0
    %93 = vmatpush1.msra.mxu0 0.0
    %94 = vmatprep.subr.mxu0 0.0
    %95 = vmatpush1.msra.mxu0 0.0
    %96 = vmatprep.subr.mxu0 0.0
    %97 = vmatpush1.msra.mxu0 0.0
    %98 = vmatprep.subr.mxu0 0.0
    %99 = vmatpush1.msra.mxu0 0.0
    %100 = vmatprep.mubr.f32.mxu0 0.0
    %101 = vmatmul.mubr.f32.gmra.mrb[0].mxu0 %v30
    %v102 = vpop.f32.mrb[0].mxu0
    %v103 = vadd.f32 0.0, %v102
    %v104 = vpop.f32.mrb[0].mxu0
    %105 = vdwg.mxu0
    %vm106 = vcmask 261120
    %107 = vst.msk [vmem:[#allocation2] sm:$0xff] %vm106, %v103
    %108 = vset.pattern.permute.xlu0 1
    %109 = vperm.xlu0 %108, %v12
    %v110 = vpop.permute.xlu0 %109
    %vm111 = vcmp.eq.s32.totalorder %v21, %v110
    %v112 = vsel %vm111, 1, 0
    %v113 = vcvt.s32.f32 %v112
    %v115 = vsel %vm28, %v113, 0
    %117 = vmatprep.subr.mxu0 0.0
    %118 = vmatpush1.msra.mxu0 %v13
    %119 = vmatprep.subr.mxu0 0.0
    %120 = vmatpush1.msra.mxu0 %v14
    %121 = vmatprep.subr.mxu0 0.0
    %122 = vmatpush1.msra.mxu0 %v15
    %123 = vmatprep.subr.mxu0 0.0
    %124 = vmatpush1.msra.mxu0 %v16
    %125 = vmatprep.subr.mxu0 0.0
    %126 = vmatpush1.msra.mxu0 %v17
    %127 = vmatprep.subr.mxu0 0.0
    %128 = vmatpush1.msra.mxu0 %v18
    %129 = vmatprep.subr.mxu0 0.0
    %130 = vmatpush1.msra.mxu0 %v34
    %131 = vmatprep.subr.mxu0 0.0
    %132 = vmatpush1.msra.mxu0 0.0
    %133 = vmatprep.subr.mxu0 0.0
    %134 = vmatpush1.msra.mxu0 0.0
    %135 = vmatprep.subr.mxu0 0.0
    %136 = vmatpush1.msra.mxu0 0.0
    %137 = vmatprep.subr.mxu0 0.0
    %138 = vmatpush1.msra.mxu0 0.0
    %139 = vmatprep.subr.mxu0 0.0
    %140 = vmatpush1.msra.mxu0 0.0
    %141 = vmatprep.subr.mxu0 0.0
    %142 = vmatpush1.msra.mxu0 0.0
    %143 = vmatprep.subr.mxu0 0.0
    %144 = vmatpush1.msra.mxu0 0.0
    %145 = vmatprep.subr.mxu0 0.0
    %146 = vmatpush1.msra.mxu0 0.0
    %147 = vmatprep.subr.mxu0 0.0
    %148 = vmatpush1.msra.mxu0 0.0
    %149 = vmatprep.subr.mxu0 0.0
    %150 = vmatpush1.msra.mxu0 0.0
    %151 = vmatprep.subr.mxu0 0.0
    %152 = vmatpush1.msra.mxu0 0.0
    %153 = vmatprep.subr.mxu0 0.0
    %154 = vmatpush1.msra.mxu0 0.0
    %155 = vmatprep.subr.mxu0 0.0
    %156 = vmatpush1.msra.mxu0 0.0
    %157 = vmatprep.subr.mxu0 0.0
    %158 = vmatpush1.msra.mxu0 0.0
    %159 = vmatprep.subr.mxu0 0.0
    %160 = vmatpush1.msra.mxu0 0.0
    %161 = vmatprep.subr.mxu0 0.0
    %162 = vmatpush1.msra.mxu0 0.0
    %163 = vmatprep.subr.mxu0 0.0
    %164 = vmatpush1.msra.mxu0 0.0
    %165 = vmatprep.subr.mxu0 0.0
    %166 = vmatpush1.msra.mxu0 0.0
    %167 = vmatprep.subr.mxu0 0.0
    %168 = vmatpush1.msra.mxu0 0.0
    %169 = vmatprep.subr.mxu0 0.0
    %170 = vmatpush1.msra.mxu0 0.0
    %171 = vmatprep.subr.mxu0 0.0
    %172 = vmatpush1.msra.mxu0 0.0
    %173 = vmatprep.subr.mxu0 0.0
    %174 = vmatpush1.msra.mxu0 0.0
    %175 = vmatprep.subr.mxu0 0.0
    %176 = vmatpush1.msra.mxu0 0.0
    %177 = vmatprep.subr.mxu0 0.0
    %178 = vmatpush1.msra.mxu0 0.0
    %179 = vmatprep.subr.mxu0 0.0
    %180 = vmatpush1.msra.mxu0 0.0
    %181 = vmatprep.mubr.f32.mxu0 0.0
    %182 = vmatmul.mubr.f32.gmra.mrb[0].mxu0 %v115
    %v183 = vpop.f32.mrb[0].mxu0
    %v184 = vadd.f32 0.0, %v183
    %v185 = vpop.f32.mrb[0].mxu0
    %186 = vdwg.mxu0
    %188 = vrot.lane.b32.xlu0 %v184, 32
    %v189 = vpop.permute.xlu0 %188
    %vm191 = vcmask 523520
    %192 = vst.msk [vmem:[#allocation2] sm:$0xff] %vm191, %v189
    %193 = vset.pattern.permute.xlu0 2
    %194 = vperm.xlu0 %193, %v12
    %v195 = vpop.permute.xlu0 %194
    %vm196 = vcmp.eq.s32.totalorder %v21, %v195
    %v197 = vsel %vm196, 1, 0
    %v198 = vcvt.s32.f32 %v197
    %v200 = vsel %vm28, %v198, 0
    %202 = vmatprep.subr.mxu0 0.0
    %203 = vmatpush1.msra.mxu0 %v13
    %204 = vmatprep.subr.mxu0 0.0
    %205 = vmatpush1.msra.mxu0 %v14
    %206 = vmatprep.subr.mxu0 0.0
    %207 = vmatpush1.msra.mxu0 %v15
    %208 = vmatprep.subr.mxu0 0.0
    %209 = vmatpush1.msra.mxu0 %v16
    %210 = vmatprep.subr.mxu0 0.0
    %211 = vmatpush1.msra.mxu0 %v17
    %212 = vmatprep.subr.mxu0 0.0
    %213 = vmatpush1.msra.mxu0 %v18
    %214 = vmatprep.subr.mxu0 0.0
    %215 = vmatpush1.msra.mxu0 %v34
    %216 = vmatprep.subr.mxu0 0.0
    %217 = vmatpush1.msra.mxu0 0.0
    %218 = vmatprep.subr.mxu0 0.0
    %219 = vmatpush1.msra.mxu0 0.0
    %220 = vmatprep.subr.mxu0 0.0
    %221 = vmatpush1.msra.mxu0 0.0
    %222 = vmatprep.subr.mxu0 0.0
    %223 = vmatpush1.msra.mxu0 0.0
    %224 = vmatprep.subr.mxu0 0.0
    %225 = vmatpush1.msra.mxu0 0.0
    %226 = vmatprep.subr.mxu0 0.0
    %227 = vmatpush1.msra.mxu0 0.0
    %228 = vmatprep.subr.mxu0 0.0
    %229 = vmatpush1.msra.mxu0 0.0
    %230 = vmatprep.subr.mxu0 0.0
    %231 = vmatpush1.msra.mxu0 0.0
    %232 = vmatprep.subr.mxu0 0.0
    %233 = vmatpush1.msra.mxu0 0.0
    %234 = vmatprep.subr.mxu0 0.0
    %235 = vmatpush1.msra.mxu0 0.0
    %236 = vmatprep.subr.mxu0 0.0
    %237 = vmatpush1.msra.mxu0 0.0
    %238 = vmatprep.subr.mxu0 0.0
    %239 = vmatpush1.msra.mxu0 0.0
    %240 = vmatprep.subr.mxu0 0.0
    %241 = vmatpush1.msra.mxu0 0.0
    %242 = vmatprep.subr.mxu0 0.0
    %243 = vmatpush1.msra.mxu0 0.0
    %244 = vmatprep.subr.mxu0 0.0
    %245 = vmatpush1.msra.mxu0 0.0
    %246 = vmatprep.subr.mxu0 0.0
    %247 = vmatpush1.msra.mxu0 0.0
    %248 = vmatprep.subr.mxu0 0.0
    %249 = vmatpush1.msra.mxu0 0.0
    %250 = vmatprep.subr.mxu0 0.0
    %251 = vmatpush1.msra.mxu0 0.0
    %252 = vmatprep.subr.mxu0 0.0
    %253 = vmatpush1.msra.mxu0 0.0
    %254 = vmatprep.subr.mxu0 0.0
    %255 = vmatpush1.msra.mxu0 0.0
    %256 = vmatprep.subr.mxu0 0.0
    %257 = vmatpush1.msra.mxu0 0.0
    %258 = vmatprep.subr.mxu0 0.0
    %259 = vmatpush1.msra.mxu0 0.0
    %260 = vmatprep.subr.mxu0 0.0
    %261 = vmatpush1.msra.mxu0 0.0
    %262 = vmatprep.subr.mxu0 0.0
    %263 = vmatpush1.msra.mxu0 0.0
    %264 = vmatprep.subr.mxu0 0.0
    %265 = vmatpush1.msra.mxu0 0.0
    %266 = vmatprep.mubr.f32.mxu0 0.0
    %267 = vmatmul.mubr.f32.gmra.mrb[0].mxu0 %v200
    %v268 = vpop.f32.mrb[0].mxu0
    %v269 = vadd.f32 0.0, %v268
    %v270 = vpop.f32.mrb[0].mxu0
    %271 = vdwg.mxu0
    %273 = vrot.lane.b32.xlu0 %v269, 64
    %v274 = vpop.permute.xlu0 %273
    %vm276 = vcmask 785920
    %277 = vst.msk [vmem:[#allocation2] sm:$0xff] %vm276, %v274
    %278 = vset.pattern.permute.xlu0 3
    %279 = vperm.xlu0 %278, %v12
    %v280 = vpop.permute.xlu0 %279
    %vm281 = vcmp.eq.s32.totalorder %v21, %v280
    %v282 = vsel %vm281, 1, 0
    %v283 = vcvt.s32.f32 %v282
    %v285 = vsel %vm28, %v283, 0
    %287 = vmatprep.subr.mxu0 0.0
    %288 = vmatpush1.msra.mxu0 %v13
    %289 = vmatprep.subr.mxu0 0.0
    %290 = vmatpush1.msra.mxu0 %v14
    %291 = vmatprep.subr.mxu0 0.0
    %292 = vmatpush1.msra.mxu0 %v15
    %293 = vmatprep.subr.mxu0 0.0
    %294 = vmatpush1.msra.mxu0 %v16
    %295 = vmatprep.subr.mxu0 0.0
    %296 = vmatpush1.msra.mxu0 %v17
    %297 = vmatprep.subr.mxu0 0.0
    %298 = vmatpush1.msra.mxu0 %v18
    %299 = vmatprep.subr.mxu0 0.0
    %300 = vmatpush1.msra.mxu0 %v34
    %301 = vmatprep.subr.mxu0 0.0
    %302 = vmatpush1.msra.mxu0 0.0
    %303 = vmatprep.subr.mxu0 0.0
    %304 = vmatpush1.msra.mxu0 0.0
    %305 = vmatprep.subr.mxu0 0.0
    %306 = vmatpush1.msra.mxu0 0.0
    %307 = vmatprep.subr.mxu0 0.0
    %308 = vmatpush1.msra.mxu0 0.0
    %309 = vmatprep.subr.mxu0 0.0
    %310 = vmatpush1.msra.mxu0 0.0
    %311 = vmatprep.subr.mxu0 0.0
    %312 = vmatpush1.msra.mxu0 0.0
    %313 = vmatprep.subr.mxu0 0.0
    %314 = vmatpush1.msra.mxu0 0.0
    %315 = vmatprep.subr.mxu0 0.0
    %316 = vmatpush1.msra.mxu0 0.0
    %317 = vmatprep.subr.mxu0 0.0
    %318 = vmatpush1.msra.mxu0 0.0
    %319 = vmatprep.subr.mxu0 0.0
    %320 = vmatpush1.msra.mxu0 0.0
    %321 = vmatprep.subr.mxu0 0.0
    %322 = vmatpush1.msra.mxu0 0.0
    %323 = vmatprep.subr.mxu0 0.0
    %324 = vmatpush1.msra.mxu0 0.0
    %325 = vmatprep.subr.mxu0 0.0
    %326 = vmatpush1.msra.mxu0 0.0
    %327 = vmatprep.subr.mxu0 0.0
    %328 = vmatpush1.msra.mxu0 0.0
    %329 = vmatprep.subr.mxu0 0.0
    %330 = vmatpush1.msra.mxu0 0.0
    %331 = vmatprep.subr.mxu0 0.0
    %332 = vmatpush1.msra.mxu0 0.0
    %333 = vmatprep.subr.mxu0 0.0
    %334 = vmatpush1.msra.mxu0 0.0
    %335 = vmatprep.subr.mxu0 0.0
    %336 = vmatpush1.msra.mxu0 0.0
    %337 = vmatprep.subr.mxu0 0.0
    %338 = vmatpush1.msra.mxu0 0.0
    %339 = vmatprep.subr.mxu0 0.0
    %340 = vmatpush1.msra.mxu0 0.0
    %341 = vmatprep.subr.mxu0 0.0
    %342 = vmatpush1.msra.mxu0 0.0
    %343 = vmatprep.subr.mxu0 0.0
    %344 = vmatpush1.msra.mxu0 0.0
    %345 = vmatprep.subr.mxu0 0.0
    %346 = vmatpush1.msra.mxu0 0.0
    %347 = vmatprep.subr.mxu0 0.0
    %348 = vmatpush1.msra.mxu0 0.0
    %349 = vmatprep.subr.mxu0 0.0
    %350 = vmatpush1.msra.mxu0 0.0
    %351 = vmatprep.mubr.f32.mxu0 0.0
    %352 = vmatmul.mubr.f32.gmra.mrb[0].mxu0 %v285
    %v353 = vpop.f32.mrb[0].mxu0
    %v354 = vadd.f32 0.0, %v353
    %v355 = vpop.f32.mrb[0].mxu0
    %356 = vdwg.mxu0
    %358 = vrot.lane.b32.xlu0 %v354, 96
    %v359 = vpop.permute.xlu0 %358
    %vm361 = vcmask 1048320
    %362 = vst.msk [vmem:[#allocation2] sm:$0xff] %vm361, %v359
    // Predicated region
    $region10: #{tpu_custom_call.1} parent=1 // pred_check
      _
    $region11: #{tpu_custom_call.1} parent=1 // pred_check_branch
      %364 = sbr.rel (0) target = $region13
    $region12: #{tpu_custom_call.1} parent=1 // pred_region
      %s366 = ssub.s32 128, 128
      %367 = vsyncadd [#allocation3], %s366
      %s369 = sshll.u32 [#allocation2], 4
      %s370 = int_to_ptr.vmem [resolvable:$true] %s369
      %372 = dma.vmem_to_hbm [thread:$0]  %s370, 128, %s2, [#allocation3]
    $region13: #{tpu_custom_call.1} parent=1 // pred_fallthru
      _
    // Predicated region
    $region14: #{tpu_custom_call.1} parent=1 // pred_check
      _
    $region15: #{tpu_custom_call.1} parent=1 // pred_check_branch
      %374 = sbr.rel (0) target = $region17
    $region16: #{tpu_custom_call.1} parent=1 // pred_region
      %375 = dma.done [#allocation3], 128
    $region17: #{tpu_custom_call.1} parent=1 // pred_fallthru
      _
    %376 = vsyncpa [#allocation3], 1

</llo_original>
